<compile_context>
chip_gen: v5e
topology: v5e:2x2
jax: 0.10.0
libtpu: 0.0.40
codegen_flags: <defaults>
</compile_context>

<pallas_src>
import jax
import jax.numpy as jnp
from jax.experimental import pallas as pl
from jax.experimental.pallas import tpu as pltpu

LANE = 128


def _round_up(n, m):
    return ((n + m - 1) // m) * m


def _pad2(a, rows, cols):
    """Zero-pad a 2D array up to (rows, cols)."""
    r, c = a.shape
    if r == rows and c == cols:
        return a
    return jnp.pad(a, ((0, rows - r), (0, cols - c)))


def _leaky_relu(h, slope=0.1):
    # Elementwise in f32 (matches torch.nn.LeakyReLU(0.1)); LeakyReLU(0) == 0 so lane
    # padding stays zero through the whole MLP.
    return jnp.where(h > 0, h, slope * h)


def pose_decoder_kernel(x_ref,
                        w1_ref, b1_ref,
                        w2_ref, b2_ref,
                        w3_ref, b3_ref,
                        w4_ref, b4_ref,
                        o_ref):
    # x tile: [TM, z_dim] (bf16). Weights bf16 (lane-padded to 128), biases f32.
    # MXU accumulates in f32; VPU work (bias add, LeakyReLU) stays in f32.
    h = jnp.dot(x_ref[...], w1_ref[...], preferred_element_type=jnp.float32) + b1_ref[...]
    h = _leaky_relu(h)
    h = jnp.dot(h.astype(w2_ref.dtype), w2_ref[...], preferred_element_type=jnp.float32) + b2_ref[...]
    h = _leaky_relu(h)
    h = jnp.dot(h.astype(w3_ref.dtype), w3_ref[...], preferred_element_type=jnp.float32) + b3_ref[...]
    h = _leaky_relu(h)
    out = jnp.dot(h.astype(w4_ref.dtype), w4_ref[...], preferred_element_type=jnp.float32) + b4_ref[...]
    o_ref[...] = out.astype(o_ref.dtype)


def pose_decoder(x, params, *, block_rows=512, compute_dtype=jnp.bfloat16):
    """x: [B, z_dim] float32; params: dict of f32 weights/biases. Returns [B, pose_dim] f32."""
    B, z_dim = x.shape
    h1, h2, h3 = params["w1"].shape[1], params["w2"].shape[1], params["w3"].shape[1]
    pose_dim = params["w4"].shape[1]

    # Rows per block: multiple of 8, large enough to amortize MXU fill + per-step overhead,
    # but never larger than the (8-rounded) batch.
    tm = min(block_rows, _round_up(B, 8))
    grid = (pl.cdiv(B, tm),)

    # Lane-pad the hidden layers to 128 so every activation tile is lane-dense.
    h1p, h2p, h3p = _round_up(h1, LANE), _round_up(h2, LANE), _round_up(h3, LANE)

    # bf16 inputs/weights, f32 biases (bias add + LeakyReLU stay f32 in-kernel).
    x_c = x.astype(compute_dtype)
    w1 = _pad2(params["w1"], z_dim, h1p).astype(compute_dtype)
    w2 = _pad2(params["w2"], h1p,  h2p).astype(compute_dtype)
    w3 = _pad2(params["w3"], h2p,  h3p).astype(compute_dtype)
    w4 = _pad2(params["w4"], h3p,  pose_dim).astype(compute_dtype)
    b1 = _pad2(params["b1"], 1, h1p)
    b2 = _pad2(params["b2"], 1, h2p)
    b3 = _pad2(params["b3"], 1, h3p)
    b4 = params["b4"]

    def const_map(i):
        return (0, 0)  # weights/biases: same block every step -> DMA'd once, resident in VMEM

    flops = 2 * B * (z_dim * h1 + h1 * h2 + h2 * h3 + h3 * pose_dim)
    weight_bytes = sum(int(a.size) * a.dtype.itemsize
                       for a in (w1, w2, w3, w4, b1, b2, b3, b4))
    bytes_accessed = (B * z_dim * jnp.dtype(compute_dtype).itemsize  # x read (dominant)
                      + B * pose_dim * 4                             # f32 output write
                      + weight_bytes)

    return pl.pallas_call(
        pose_decoder_kernel,
        out_shape=jax.ShapeDtypeStruct((B, pose_dim), jnp.float32),
        grid=grid,
        in_specs=[
            pl.BlockSpec((tm, z_dim), lambda i: (i, 0)),          # x: tiled over batch
            pl.BlockSpec(w1.shape, const_map), pl.BlockSpec(b1.shape, const_map),
            pl.BlockSpec(w2.shape, const_map), pl.BlockSpec(b2.shape, const_map),
            pl.BlockSpec(w3.shape, const_map), pl.BlockSpec(b3.shape, const_map),
            pl.BlockSpec(w4.shape, const_map), pl.BlockSpec(b4.shape, const_map),
        ],
        out_specs=pl.BlockSpec((tm, pose_dim), lambda i: (i, 0)),
        compiler_params=pltpu.CompilerParams(
            dimension_semantics=("parallel",),                    # megacore shard on v7x
        ),
        cost_estimate=pl.CostEstimate(flops=flops, transcendentals=0,
                                      bytes_accessed=bytes_accessed),
    )(x_c, w1, b1, w2, b2, w3, b3, w4, b4)


def init_params(key, z_dim=256, pose_dim=6):
    """Deterministic synthetic init (stand-in for init_weights in the PyTorch module)."""
    # TODO(synk): the original init_weights() helper is external to the module; a Kaiming-style
    # init is used here as a deterministic stand-in (forward-pass semantics are unaffected).
    dims = [z_dim, 128, 64, 32, pose_dim]
    params = {}
    for i in range(4):
        key, kw, kb = jax.random.split(key, 3)
        fan_in, fan_out = dims[i], dims[i + 1]
        scale = (2.0 / fan_in) ** 0.5
        params[f"w{i+1}"] = scale * jax.random.normal(kw, (fan_in, fan_out), jnp.float32)
        # biases kept as [1, fan_out] for 2D broadcasting inside the kernel
        params[f"b{i+1}"] = 0.01 * jax.random.normal(kb, (1, fan_out), jnp.float32)
    return params


def pose_decoder_ref(x, params, compute_dtype=jnp.bfloat16):
    """Pure-JAX reference mirroring the kernel's bf16-input / f32-accumulate numerics."""
    h = x.astype(compute_dtype).astype(jnp.float32)
    for i in range(1, 5):
        w = params[f"w{i}"].astype(compute_dtype).astype(jnp.float32)
        h = jnp.dot(h, w, precision=jax.lax.Precision.HIGHEST) + params[f"b{i}"]
        if i < 4:
            h = jnp.where(h > 0, h, 0.1 * h)
            h = h.astype(compute_dtype).astype(jnp.float32)
    return h


if __name__ == "__main__":
    key = jax.random.PRNGKey(0)
    key, kx = jax.random.split(key)

    B, Z_DIM, POSE_DIM = 8, 256, 6
    x = jax.random.normal(kx, (B, Z_DIM), jnp.float32)
    params = init_params(key, z_dim=Z_DIM, pose_dim=POSE_DIM)

    out = jax.block_until_ready(pose_decoder(x, params))
    ref = pose_decoder_ref(x, params)
    assert out.shape == (B, POSE_DIM)
    assert jnp.allclose(out, ref, atol=1e-3, rtol=1e-3), float(jnp.max(jnp.abs(out - ref)))

    # Exercise a multi-step grid with a partial last block (B not a multiple of block_rows).
    key, kx2 = jax.random.split(key)
    B2 = 20
    x2 = jax.random.normal(kx2, (B2, Z_DIM), jnp.float32)
    out2 = jax.block_until_ready(pose_decoder(x2, params, block_rows=8))
    ref2 = pose_decoder_ref(x2, params)
    assert out2.shape == (B2, POSE_DIM)
    assert jnp.allclose(out2, ref2, atol=1e-3, rtol=1e-3), float(jnp.max(jnp.abs(out2 - ref2)))

    print("KERNEL_OK")
</pallas_src>

<mosaic_0001>
module attributes {stable_mosaic.version = 11 : i64} {
  func.func @pose_decoder_kernel(%arg0: i32, %arg1: memref<8x256xbf16, #tpu.memory_space<vmem>>, %arg2: memref<256x128xbf16, #tpu.memory_space<vmem>>, %arg3: memref<1x128xf32, #tpu.memory_space<vmem>>, %arg4: memref<128x128xbf16, #tpu.memory_space<vmem>>, %arg5: memref<1x128xf32, #tpu.memory_space<vmem>>, %arg6: memref<128x128xbf16, #tpu.memory_space<vmem>>, %arg7: memref<1x128xf32, #tpu.memory_space<vmem>>, %arg8: memref<128x6xbf16, #tpu.memory_space<vmem>>, %arg9: memref<1x6xf32, #tpu.memory_space<vmem>>, %arg10: memref<8x6xf32, #tpu.memory_space<vmem>>) attributes {dimension_semantics = [#tpu.dimension_semantics<parallel>], iteration_bounds = array<i64: 1>, scalar_prefetch = 0 : i64, scratch_operands = 0 : i64, tpu.core_type = #tpu.core_type<tc>, window_params = [{transform_indices = @transform_0, window_bounds = array<i64: 8, 256>}, {pipeline_mode = #tpu.pipeline_mode<synchronous>, transform_indices = @transform_1, window_bounds = array<i64: 256, 128>}, {pipeline_mode = #tpu.pipeline_mode<synchronous>, transform_indices = @transform_2, window_bounds = array<i64: 1, 128>}, {pipeline_mode = #tpu.pipeline_mode<synchronous>, transform_indices = @transform_3, window_bounds = array<i64: 128, 128>}, {pipeline_mode = #tpu.pipeline_mode<synchronous>, transform_indices = @transform_4, window_bounds = array<i64: 1, 128>}, {pipeline_mode = #tpu.pipeline_mode<synchronous>, transform_indices = @transform_5, window_bounds = array<i64: 128, 128>}, {pipeline_mode = #tpu.pipeline_mode<synchronous>, transform_indices = @transform_6, window_bounds = array<i64: 1, 128>}, {pipeline_mode = #tpu.pipeline_mode<synchronous>, transform_indices = @transform_7, window_bounds = array<i64: 128, 6>}, {pipeline_mode = #tpu.pipeline_mode<synchronous>, transform_indices = @transform_8, window_bounds = array<i64: 1, 6>}, {transform_indices = @transform_9, window_bounds = array<i64: 8, 6>}]} {
    %c0 = arith.constant 0 : index
    %c0_0 = arith.constant 0 : index
    %0 = vector.load %arg1[%c0, %c0_0] : memref<8x256xbf16, #tpu.memory_space<vmem>>, vector<8x256xbf16>
    %c0_1 = arith.constant 0 : index
    %c0_2 = arith.constant 0 : index
    %1 = vector.load %arg2[%c0_1, %c0_2] : memref<256x128xbf16, #tpu.memory_space<vmem>>, vector<256x128xbf16>
    %cst = arith.constant dense<0.000000e+00> : vector<8x128xf32>
    %2 = tpu.matmul %0, %1, %cst {dimension_numbers = #tpu.dot_dimension_numbers<[1], [0], [0], [1], [0, 0, 1, 1], [], []>} : vector<8x256xbf16>, vector<256x128xbf16>, vector<8x128xf32> -> vector<8x128xf32>
    %c0_3 = arith.constant 0 : index
    %c0_4 = arith.constant 0 : index
    %3 = vector.load %arg3[%c0_3, %c0_4] : memref<1x128xf32, #tpu.memory_space<vmem>>, vector<1x128xf32>
    %4 = vector.broadcast %3 : vector<1x128xf32> to vector<8x128xf32>
    %5 = arith.addf %2, %4 : vector<8x128xf32>
    %cst_5 = arith.constant 0.000000e+00 : f32
    %6 = vector.broadcast %cst_5 : f32 to vector<8x128xf32>
    %7 = arith.cmpf ogt, %5, %6 : vector<8x128xf32>
    %cst_6 = arith.constant 1.000000e-01 : f32
    %8 = vector.broadcast %cst_6 : f32 to vector<8x128xf32>
    %9 = arith.mulf %8, %5 : vector<8x128xf32>
    %10 = arith.select %7, %5, %9 : vector<8x128xi1>, vector<8x128xf32>
    %11 = arith.truncf %10 : vector<8x128xf32> to vector<8x128xbf16>
    %c0_7 = arith.constant 0 : index
    %c0_8 = arith.constant 0 : index
    %12 = vector.load %arg4[%c0_7, %c0_8] : memref<128x128xbf16, #tpu.memory_space<vmem>>, vector<128x128xbf16>
    %cst_9 = arith.constant dense<0.000000e+00> : vector<8x128xf32>
    %13 = tpu.matmul %11, %12, %cst_9 {dimension_numbers = #tpu.dot_dimension_numbers<[1], [0], [0], [1], [0, 0, 1, 1], [], []>} : vector<8x128xbf16>, vector<128x128xbf16>, vector<8x128xf32> -> vector<8x128xf32>
    %c0_10 = arith.constant 0 : index
    %c0_11 = arith.constant 0 : index
    %14 = vector.load %arg5[%c0_10, %c0_11] : memref<1x128xf32, #tpu.memory_space<vmem>>, vector<1x128xf32>
    %15 = vector.broadcast %14 : vector<1x128xf32> to vector<8x128xf32>
    %16 = arith.addf %13, %15 : vector<8x128xf32>
    %cst_12 = arith.constant 0.000000e+00 : f32
    %17 = vector.broadcast %cst_12 : f32 to vector<8x128xf32>
    %18 = arith.cmpf ogt, %16, %17 : vector<8x128xf32>
    %cst_13 = arith.constant 1.000000e-01 : f32
    %19 = vector.broadcast %cst_13 : f32 to vector<8x128xf32>
    %20 = arith.mulf %19, %16 : vector<8x128xf32>
    %21 = arith.select %18, %16, %20 : vector<8x128xi1>, vector<8x128xf32>
    %22 = arith.truncf %21 : vector<8x128xf32> to vector<8x128xbf16>
    %c0_14 = arith.constant 0 : index
    %c0_15 = arith.constant 0 : index
    %23 = vector.load %arg6[%c0_14, %c0_15] : memref<128x128xbf16, #tpu.memory_space<vmem>>, vector<128x128xbf16>
    %cst_16 = arith.constant dense<0.000000e+00> : vector<8x128xf32>
    %24 = tpu.matmul %22, %23, %cst_16 {dimension_numbers = #tpu.dot_dimension_numbers<[1], [0], [0], [1], [0, 0, 1, 1], [], []>} : vector<8x128xbf16>, vector<128x128xbf16>, vector<8x128xf32> -> vector<8x128xf32>
    %c0_17 = arith.constant 0 : index
    %c0_18 = arith.constant 0 : index
    %25 = vector.load %arg7[%c0_17, %c0_18] : memref<1x128xf32, #tpu.memory_space<vmem>>, vector<1x128xf32>
    %26 = vector.broadcast %25 : vector<1x128xf32> to vector<8x128xf32>
    %27 = arith.addf %24, %26 : vector<8x128xf32>
    %cst_19 = arith.constant 0.000000e+00 : f32
    %28 = vector.broadcast %cst_19 : f32 to vector<8x128xf32>
    %29 = arith.cmpf ogt, %27, %28 : vector<8x128xf32>
    %cst_20 = arith.constant 1.000000e-01 : f32
    %30 = vector.broadcast %cst_20 : f32 to vector<8x128xf32>
    %31 = arith.mulf %30, %27 : vector<8x128xf32>
    %32 = arith.select %29, %27, %31 : vector<8x128xi1>, vector<8x128xf32>
    %33 = arith.truncf %32 : vector<8x128xf32> to vector<8x128xbf16>
    %c0_21 = arith.constant 0 : index
    %c0_22 = arith.constant 0 : index
    %34 = vector.load %arg8[%c0_21, %c0_22] : memref<128x6xbf16, #tpu.memory_space<vmem>>, vector<128x6xbf16>
    %cst_23 = arith.constant dense<0.000000e+00> : vector<8x6xf32>
    %35 = tpu.matmul %33, %34, %cst_23 {dimension_numbers = #tpu.dot_dimension_numbers<[1], [0], [0], [1], [0, 0, 1, 1], [], []>} : vector<8x128xbf16>, vector<128x6xbf16>, vector<8x6xf32> -> vector<8x6xf32>
    %c0_24 = arith.constant 0 : index
    %c0_25 = arith.constant 0 : index
    %36 = vector.load %arg9[%c0_24, %c0_25] : memref<1x6xf32, #tpu.memory_space<vmem>>, vector<1x6xf32>
    %37 = vector.broadcast %36 : vector<1x6xf32> to vector<8x6xf32>
    %38 = arith.addf %35, %37 : vector<8x6xf32>
    %c0_26 = arith.constant 0 : index
    %c0_27 = arith.constant 0 : index
    %39 = vector.load %arg10[%c0_26, %c0_27] : memref<8x6xf32, #tpu.memory_space<vmem>>, vector<8x6xf32>
    tpu.vector_store %arg10[%c0_26, %c0_27], %38 {strides = array<i32>} : memref<8x6xf32, #tpu.memory_space<vmem>>, vector<8x6xf32>,
    return
  }
  func.func @transform_0(%arg0: i32) -> (i32, i32) {
    %c0_i32 = arith.constant 0 : i32
    %c0_i32_0 = arith.constant 0 : i32
    return %arg0, %c0_i32 : i32, i32
  }
  func.func @transform_1(%arg0: i32) -> (i32, i32) {
    %c0_i32 = arith.constant 0 : i32
    %c0_i32_0 = arith.constant 0 : i32
    %c0_i32_1 = arith.constant 0 : i32
    return %c0_i32, %c0_i32_0 : i32, i32
  }
  func.func @transform_2(%arg0: i32) -> (i32, i32) {
    %c0_i32 = arith.constant 0 : i32
    %c0_i32_0 = arith.constant 0 : i32
    %c0_i32_1 = arith.constant 0 : i32
    return %c0_i32, %c0_i32_0 : i32, i32
  }
  func.func @transform_3(%arg0: i32) -> (i32, i32) {
    %c0_i32 = arith.constant 0 : i32
    %c0_i32_0 = arith.constant 0 : i32
    %c0_i32_1 = arith.constant 0 : i32
    return %c0_i32, %c0_i32_0 : i32, i32
  }
  func.func @transform_4(%arg0: i32) -> (i32, i32) {
    %c0_i32 = arith.constant 0 : i32
    %c0_i32_0 = arith.constant 0 : i32
    %c0_i32_1 = arith.constant 0 : i32
    return %c0_i32, %c0_i32_0 : i32, i32
  }
  func.func @transform_5(%arg0: i32) -> (i32, i32) {
    %c0_i32 = arith.constant 0 : i32
    %c0_i32_0 = arith.constant 0 : i32
    %c0_i32_1 = arith.constant 0 : i32
    return %c0_i32, %c0_i32_0 : i32, i32
  }
  func.func @transform_6(%arg0: i32) -> (i32, i32) {
    %c0_i32 = arith.constant 0 : i32
    %c0_i32_0 = arith.constant 0 : i32
    %c0_i32_1 = arith.constant 0 : i32
    return %c0_i32, %c0_i32_0 : i32, i32
  }
  func.func @transform_7(%arg0: i32) -> (i32, i32) {
    %c0_i32 = arith.constant 0 : i32
    %c0_i32_0 = arith.constant 0 : i32
    %c0_i32_1 = arith.constant 0 : i32
    return %c0_i32, %c0_i32_0 : i32, i32
  }
  func.func @transform_8(%arg0: i32) -> (i32, i32) {
    %c0_i32 = arith.constant 0 : i32
    %c0_i32_0 = arith.constant 0 : i32
    %c0_i32_1 = arith.constant 0 : i32
    return %c0_i32, %c0_i32_0 : i32, i32
  }
  func.func @transform_9(%arg0: i32) -> (i32, i32) {
    %c0_i32 = arith.constant 0 : i32
    %c0_i32_0 = arith.constant 0 : i32
    return %arg0, %c0_i32 : i32, i32
  }
}

</mosaic_0001>

<llo_original>
// kernel: tpu_custom_call.1
$region0: #{tpu_custom_call.1}
  #allocation0 [shape = 'u32[]', space=smem, size = 0x4, offset = 0x4, fixed_abs, tag = 'smem constant byte address 0x4 - core index']
  #allocation1 [shape = 'u32[72,128]{1,0:T(1,128)}', space=vmem, size = 0x9000, scoped, tag = 'internal scratch']
  %s0 = inlined_call_operand.hbm [shape: bf16[8,256], index: 0, kind: input, shape index: {}]
  %s1 = inlined_call_operand.hbm [shape: bf16[256,128], index: 1, kind: input, shape index: {}]
  %s2 = inlined_call_operand.vmem [shape: f32[1,128], index: 2, kind: input, shape index: {}]
  %s3 = inlined_call_operand.vmem [shape: bf16[128,128], index: 3, kind: input, shape index: {}]
  %s4 = inlined_call_operand.vmem [shape: f32[1,128], index: 4, kind: input, shape index: {}]
  %s5 = inlined_call_operand.hbm [shape: bf16[128,128], index: 5, kind: input, shape index: {}]
  %s6 = inlined_call_operand.vmem [shape: f32[1,128], index: 6, kind: input, shape index: {}]
  %s7 = inlined_call_operand.vmem [shape: bf16[128,6], index: 7, kind: input, shape index: {}]
  %s8 = inlined_call_operand.vmem [shape: f32[1,6], index: 8, kind: input, shape index: {}]
  %s9 = inlined_call_operand.hbm [shape: f32[8,6], index: 9, kind: output, shape index: {}]
  %s10 = sld [smem:[#allocation0]]
  $region58: #{tpu_custom_call.1} parent=0
    _
  %s12 = ssub.s32 1, %s10
  %s13 = scalar_select 0, %s12, %s10
  $region1: #{tpu_custom_call.1} parent=0
    #allocation2 [shape = 'u8[4096]{0}', space=vmem, size = 0x1000, scoped, tag = 'input window, operand 0, single buffered']
    #allocation3 [shape = 's32[1]{0}', space=sflag, size = 0x4, scoped, tag = 'scoped memory for tpu_custom_call.1']
    #allocation4 [shape = 's32[1]{0}', space=sflag, size = 0x4, scoped, tag = 'scoped memory for tpu_custom_call.1']
    #allocation5 [shape = 'u8[65536]{0}', space=vmem, size = 0x10000, scoped, tag = 'input window, operand 1, single buffered']
    #allocation6 [shape = 's32[1]{0}', space=sflag, size = 0x4, scoped, tag = 'scoped memory for tpu_custom_call.1']
    #allocation7 [shape = 'u8[32768]{0}', space=vmem, size = 0x8000, scoped, tag = 'input window, operand 5, single buffered']
    #allocation8 [shape = 'u8[4096]{0}', space=vmem, size = 0x1000, scoped, tag = 'output window, operand 0, single buffered']
    %14 = vsyncpa [#allocation3], 0
    %15 = vsyncpa [#allocation6], 0
    %16 = vsyncpa [#allocation4], 0
    // Predicated region
    $region2: #{tpu_custom_call.1} parent=1 // pred_check
      _
    $region3: #{tpu_custom_call.1} parent=1 // pred_check_branch
      %18 = sbr.rel (0) target = $region5
    $region4: #{tpu_custom_call.1} parent=1 // pred_region
      %20 = vsyncadd [#allocation3], 0
      %s22 = sshll.u32 %s0, 4
      %s23 = int_to_ptr.hbm [resolvable:$true] %s22
      %s24 = sshll.u32 [#allocation2], 4
      %s25 = int_to_ptr.vmem [resolvable:$true] %s24
      %27 = dma.hbm_to_vmem [thread:$0]  %s23, 128, %s25, [#allocation3]
    $region5: #{tpu_custom_call.1} parent=1 // pred_fallthru
      _
    // Predicated region
    $region6: #{tpu_custom_call.1} parent=1 // pred_check
      _
    $region7: #{tpu_custom_call.1} parent=1 // pred_check_branch
      %29 = sbr.rel (0) target = $region9
    $region8: #{tpu_custom_call.1} parent=1 // pred_region
      %31 = vsyncadd [#allocation6], 0
      %s32 = sshll.u32 %s1, 4
      %s33 = int_to_ptr.hbm [resolvable:$true] %s32
      %s34 = sshll.u32 [#allocation5], 4
      %s35 = int_to_ptr.vmem [resolvable:$true] %s34
      %40 = dma.hbm_to_vmem [thread:$0]  %s33, 2048, %s35, [#allocation6], 64, 64, 4
    $region9: #{tpu_custom_call.1} parent=1 // pred_fallthru
      _
    // Predicated region
    $region10: #{tpu_custom_call.1} parent=1 // pred_check
      _
    $region11: #{tpu_custom_call.1} parent=1 // pred_check_branch
      %42 = sbr.rel (0) target = $region13
    $region12: #{tpu_custom_call.1} parent=1 // pred_region
      _
    $region13: #{tpu_custom_call.1} parent=1 // pred_fallthru
      _
    // Predicated region
    $region14: #{tpu_custom_call.1} parent=1 // pred_check
      _
    $region15: #{tpu_custom_call.1} parent=1 // pred_check_branch
      %44 = sbr.rel (0) target = $region17
    $region16: #{tpu_custom_call.1} parent=1 // pred_region
      _
    $region17: #{tpu_custom_call.1} parent=1 // pred_fallthru
      _
    // Predicated region
    $region18: #{tpu_custom_call.1} parent=1 // pred_check
      _
    $region19: #{tpu_custom_call.1} parent=1 // pred_check_branch
      %46 = sbr.rel (0) target = $region21
    $region20: #{tpu_custom_call.1} parent=1 // pred_region
      _
    $region21: #{tpu_custom_call.1} parent=1 // pred_fallthru
      _
    // Predicated region
    $region22: #{tpu_custom_call.1} parent=1 // pred_check
      _
    $region23: #{tpu_custom_call.1} parent=1 // pred_check_branch
      %48 = sbr.rel (0) target = $region25
    $region24: #{tpu_custom_call.1} parent=1 // pred_region
      %50 = vsyncadd [#allocation6], 0
      %s51 = sshll.u32 %s5, 4
      %s52 = int_to_ptr.hbm [resolvable:$true] %s51
      %s53 = sshll.u32 [#allocation7], 4
      %s54 = int_to_ptr.vmem [resolvable:$true] %s53
      %59 = dma.hbm_to_vmem [thread:$0]  %s52, 1024, %s54, [#allocation6], 64, 64, 4
    $region25: #{tpu_custom_call.1} parent=1 // pred_fallthru
      _
    // Predicated region
    $region26: #{tpu_custom_call.1} parent=1 // pred_check
      _
    $region27: #{tpu_custom_call.1} parent=1 // pred_check_branch
      %61 = sbr.rel (0) target = $region29
    $region28: #{tpu_custom_call.1} parent=1 // pred_region
      _
    $region29: #{tpu_custom_call.1} parent=1 // pred_fallthru
      _
    // Predicated region
    $region30: #{tpu_custom_call.1} parent=1 // pred_check
      _
    $region31: #{tpu_custom_call.1} parent=1 // pred_check_branch
      %63 = sbr.rel (0) target = $region33
    $region32: #{tpu_custom_call.1} parent=1 // pred_region
      _
    $region33: #{tpu_custom_call.1} parent=1 // pred_fallthru
      _
    // Predicated region
    $region34: #{tpu_custom_call.1} parent=1 // pred_check
      _
    $region35: #{tpu_custom_call.1} parent=1 // pred_check_branch
      %65 = sbr.rel (0) target = $region37
    $region36: #{tpu_custom_call.1} parent=1 // pred_region
      _
    $region37: #{tpu_custom_call.1} parent=1 // pred_fallthru
      _
    // Predicated region
    $region38: #{tpu_custom_call.1} parent=1 // pred_check
      _
    $region39: #{tpu_custom_call.1} parent=1 // pred_check_branch
      %67 = sbr.rel (0) target = $region41
    $region40: #{tpu_custom_call.1} parent=1 // pred_region
      %69 = dma.done [#allocation3], 128
    $region41: #{tpu_custom_call.1} parent=1 // pred_fallthru
      _
    // Predicated region
    $region42: #{tpu_custom_call.1} parent=1 // pred_check
      _
    $region43: #{tpu_custom_call.1} parent=1 // pred_check_branch
      %71 = sbr.rel (0) target = $region45
    $region44: #{tpu_custom_call.1} parent=1 // pred_region
      %73 = dma.done [#allocation6], 2048
    $region45: #{tpu_custom_call.1} parent=1 // pred_fallthru
      _
    // Predicated region
    $region46: #{tpu_custom_call.1} parent=1 // pred_check
      _
    $region47: #{tpu_custom_call.1} parent=1 // pred_check_branch
      %75 = sbr.rel (0) target = $region49
    $region48: #{tpu_custom_call.1} parent=1 // pred_region
      %77 = dma.done [#allocation6], 1024
    $region49: #{tpu_custom_call.1} parent=1 // pred_fallthru
      _
    %v78 = vld [vmem:[#allocation2] sm:$0xff]
    %v79 = vld [vmem:[#allocation5] sm:$0xf]
    %v80 = vld [vmem:[#allocation5 + $0x4] sm:$0xf]
    %v81 = vld [vmem:[#allocation5 + $0x8] sm:$0xf]
    %v82 = vld [vmem:[#allocation5 + $0xc] sm:$0xf]
    %v83 = vld [vmem:[#allocation5 + $0x10] sm:$0xf]
    %v84 = vld [vmem:[#allocation5 + $0x14] sm:$0xf]
    %v85 = vld [vmem:[#allocation5 + $0x18] sm:$0xf]
    %v86 = vld [vmem:[#allocation5 + $0x1c] sm:$0xf]
    %v87 = vld [vmem:[#allocation5 + $0x20] sm:$0xf]
    %v88 = vld [vmem:[#allocation5 + $0x24] sm:$0xf]
    %v89 = vld [vmem:[#allocation5 + $0x28] sm:$0xf]
    %v90 = vld [vmem:[#allocation5 + $0x2c] sm:$0xf]
    %v91 = vld [vmem:[#allocation5 + $0x30] sm:$0xf]
    %v92 = vld [vmem:[#allocation5 + $0x34] sm:$0xf]
    %v93 = vld [vmem:[#allocation5 + $0x38] sm:$0xf]
    %v94 = vld [vmem:[#allocation5 + $0x3c] sm:$0xf]
    %v95 = vld [vmem:[#allocation5 + $0x40] sm:$0xf]
    %v96 = vld [vmem:[#allocation5 + $0x44] sm:$0xf]
    %v97 = vld [vmem:[#allocation5 + $0x48] sm:$0xf]
    %v98 = vld [vmem:[#allocation5 + $0x4c] sm:$0xf]
    %v99 = vld [vmem:[#allocation5 + $0x50] sm:$0xf]
    %v100 = vld [vmem:[#allocation5 + $0x54] sm:$0xf]
    %v101 = vld [vmem:[#allocation5 + $0x58] sm:$0xf]
    %v102 = vld [vmem:[#allocation5 + $0x5c] sm:$0xf]
    %v103 = vld [vmem:[#allocation5 + $0x60] sm:$0xf]
    %v104 = vld [vmem:[#allocation5 + $0x64] sm:$0xf]
    %v105 = vld [vmem:[#allocation5 + $0x68] sm:$0xf]
    %v106 = vld [vmem:[#allocation5 + $0x6c] sm:$0xf]
    %v107 = vld [vmem:[#allocation5 + $0x70] sm:$0xf]
    %v108 = vld [vmem:[#allocation5 + $0x74] sm:$0xf]
    %v109 = vld [vmem:[#allocation5 + $0x78] sm:$0xf]
    %v110 = vld [vmem:[#allocation5 + $0x7c] sm:$0xf]
    %v111 = vld [vmem:[%s2] sm:$0x1]
    %v113 = vperm.slane %v111, 0
    %v116 = vunpack.c.l.b16 %v78
    %v117 = vunpack.c.h.b16 %v78
    %v118 = vpack.c.b16 %v116, %v116
    %v119 = vpack.c.b16 %v117, %v117
    %v154 = vunpack.c.l.b16 %v79
    %v155 = vunpack.c.l.b16 %v80
    %v156 = vunpack.c.l.b16 %v81
    %v157 = vunpack.c.l.b16 %v82
    %v158 = vunpack.c.l.b16 %v83
    %v159 = vunpack.c.l.b16 %v84
    %v160 = vunpack.c.l.b16 %v85
    %v161 = vunpack.c.l.b16 %v86
    %v162 = vunpack.c.l.b16 %v87
    %v163 = vunpack.c.l.b16 %v88
    %v164 = vunpack.c.l.b16 %v89
    %v165 = vunpack.c.l.b16 %v90
    %v166 = vunpack.c.l.b16 %v91
    %v167 = vunpack.c.l.b16 %v92
    %v168 = vunpack.c.l.b16 %v93
    %v169 = vunpack.c.l.b16 %v94
    %v170 = vunpack.c.l.b16 %v95
    %v171 = vunpack.c.l.b16 %v96
    %v172 = vunpack.c.l.b16 %v97
    %v173 = vunpack.c.l.b16 %v98
    %v174 = vunpack.c.l.b16 %v99
    %v175 = vunpack.c.l.b16 %v100
    %v176 = vunpack.c.l.b16 %v101
    %v177 = vunpack.c.l.b16 %v102
    %v178 = vunpack.c.l.b16 %v103
    %v179 = vunpack.c.l.b16 %v104
    %v180 = vunpack.c.l.b16 %v105
    %v181 = vunpack.c.l.b16 %v106
    %v182 = vunpack.c.l.b16 %v107
    %v183 = vunpack.c.l.b16 %v108
    %v184 = vunpack.c.l.b16 %v109
    %v185 = vunpack.c.l.b16 %v110
    %v186 = vpack.c.b16 %v155, %v154
    %v187 = vpack.c.b16 %v157, %v156
    %v188 = vpack.c.b16 %v159, %v158
    %v189 = vpack.c.b16 %v161, %v160
    %v190 = vpack.c.b16 %v163, %v162
    %v191 = vpack.c.b16 %v165, %v164
    %v192 = vpack.c.b16 %v167, %v166
    %v193 = vpack.c.b16 %v169, %v168
    %v194 = vpack.c.b16 %v171, %v170
    %v195 = vpack.c.b16 %v173, %v172
    %v196 = vpack.c.b16 %v175, %v174
    %v197 = vpack.c.b16 %v177, %v176
    %v198 = vpack.c.b16 %v179, %v178
    %v199 = vpack.c.b16 %v181, %v180
    %v200 = vpack.c.b16 %v183, %v182
    %v201 = vpack.c.b16 %v185, %v184
    %218 = vmatpush.bf16.msra.mxu0 %v193
    %219 = vmatpush.bf16.msra.mxu0 %v192
    %220 = vmatpush.bf16.msra.mxu0 %v191
    %221 = vmatpush.bf16.msra.mxu0 %v190
    %222 = vmatpush.bf16.msra.mxu0 %v189
    %223 = vmatpush.bf16.msra.mxu0 %v188
    %224 = vmatpush.bf16.msra.mxu0 %v187
    %225 = vmatpush.bf16.msra.mxu0 %v186
    %226 = vmatmul.bf16.gmra.mxu0 %v118
    %v227 = vpop.f32.mrf.mxu0
    %v228 = vadd.f32 %v113, %v227
    %v229 = vpop.f32.mrf.mxu0
    %230 = vdwg.mxu0
    %231 = vmatpush.bf16.msra.mxu0 %v201
    %232 = vmatpush.bf16.msra.mxu0 %v200
    %233 = vmatpush.bf16.msra.mxu0 %v199
    %234 = vmatpush.bf16.msra.mxu0 %v198
    %235 = vmatpush.bf16.msra.mxu0 %v197
    %236 = vmatpush.bf16.msra.mxu0 %v196
    %237 = vmatpush.bf16.msra.mxu0 %v195
    %238 = vmatpush.bf16.msra.mxu0 %v194
    %239 = vmatmul.bf16.gmra.mxu0 %v119
    %v240 = vpop.f32.mrf.mxu0
    %v241 = vadd.f32 %v228, %v240
    %v242 = vpop.f32.mrf.mxu0
    %243 = vdwg.mxu0
    %vm244 = vcmp.gt.f32.partialorder %v241, 0.0
    %v245 = vmul.f32 %v241, 0.1
    %v246 = vsel %vm244, %v241, %v245
    %v247 = vpack.c.bf16 %v246, %v246
    %v248 = vld [vmem:[%s3] sm:$0xf]
    %v249 = vld [vmem:[%s3 + $0x4] sm:$0xf]
    %v250 = vld [vmem:[%s3 + $0x8] sm:$0xf]
    %v251 = vld [vmem:[%s3 + $0xc] sm:$0xf]
    %v252 = vld [vmem:[%s3 + $0x10] sm:$0xf]
    %v253 = vld [vmem:[%s3 + $0x14] sm:$0xf]
    %v254 = vld [vmem:[%s3 + $0x18] sm:$0xf]
    %v255 = vld [vmem:[%s3 + $0x1c] sm:$0xf]
    %v256 = vld [vmem:[%s3 + $0x20] sm:$0xf]
    %v257 = vld [vmem:[%s3 + $0x24] sm:$0xf]
    %v258 = vld [vmem:[%s3 + $0x28] sm:$0xf]
    %v259 = vld [vmem:[%s3 + $0x2c] sm:$0xf]
    %v260 = vld [vmem:[%s3 + $0x30] sm:$0xf]
    %v261 = vld [vmem:[%s3 + $0x34] sm:$0xf]
    %v262 = vld [vmem:[%s3 + $0x38] sm:$0xf]
    %v263 = vld [vmem:[%s3 + $0x3c] sm:$0xf]
    %v264 = vld [vmem:[%s4] sm:$0x1]
    %v266 = vperm.slane %v264, 0
    %v284 = vunpack.c.l.b16 %v248
    %v285 = vunpack.c.l.b16 %v249
    %v286 = vunpack.c.l.b16 %v250
    %v287 = vunpack.c.l.b16 %v251
    %v288 = vunpack.c.l.b16 %v252
    %v289 = vunpack.c.l.b16 %v253
    %v290 = vunpack.c.l.b16 %v254
    %v291 = vunpack.c.l.b16 %v255
    %v292 = vunpack.c.l.b16 %v256
    %v293 = vunpack.c.l.b16 %v257
    %v294 = vunpack.c.l.b16 %v258
    %v295 = vunpack.c.l.b16 %v259
    %v296 = vunpack.c.l.b16 %v260
    %v297 = vunpack.c.l.b16 %v261
    %v298 = vunpack.c.l.b16 %v262
    %v299 = vunpack.c.l.b16 %v263
    %v300 = vpack.c.b16 %v285, %v284
    %v301 = vpack.c.b16 %v287, %v286
    %v302 = vpack.c.b16 %v289, %v288
    %v303 = vpack.c.b16 %v291, %v290
    %v304 = vpack.c.b16 %v293, %v292
    %v305 = vpack.c.b16 %v295, %v294
    %v306 = vpack.c.b16 %v297, %v296
    %v307 = vpack.c.b16 %v299, %v298
    %316 = vmatpush.bf16.msra.mxu0 %v307
    %317 = vmatpush.bf16.msra.mxu0 %v306
    %318 = vmatpush.bf16.msra.mxu0 %v305
    %319 = vmatpush.bf16.msra.mxu0 %v304
    %320 = vmatpush.bf16.msra.mxu0 %v303
    %321 = vmatpush.bf16.msra.mxu0 %v302
    %322 = vmatpush.bf16.msra.mxu0 %v301
    %323 = vmatpush.bf16.msra.mxu0 %v300
    %324 = vmatmul.bf16.gmra.mxu0 %v247
    %v325 = vpop.f32.mrf.mxu0
    %v326 = vadd.f32 %v266, %v325
    %v327 = vpop.f32.mrf.mxu0
    %328 = vdwg.mxu0
    %vm329 = vcmp.gt.f32.partialorder %v326, 0.0
    %v330 = vmul.f32 %v326, 0.1
    %v331 = vsel %vm329, %v326, %v330
    %v332 = vpack.c.bf16 %v331, %v331
    %v333 = vld [vmem:[#allocation7] sm:$0xf]
    %v334 = vld [vmem:[#allocation7 + $0x4] sm:$0xf]
    %v335 = vld [vmem:[#allocation7 + $0x8] sm:$0xf]
    %v336 = vld [vmem:[#allocation7 + $0xc] sm:$0xf]
    %v337 = vld [vmem:[#allocation7 + $0x10] sm:$0xf]
    %v338 = vld [vmem:[#allocation7 + $0x14] sm:$0xf]
    %v339 = vld [vmem:[#allocation7 + $0x18] sm:$0xf]
    %v340 = vld [vmem:[#allocation7 + $0x1c] sm:$0xf]
    %v341 = vld [vmem:[#allocation7 + $0x20] sm:$0xf]
    %v342 = vld [vmem:[#allocation7 + $0x24] sm:$0xf]
    %v343 = vld [vmem:[#allocation7 + $0x28] sm:$0xf]
    %v344 = vld [vmem:[#allocation7 + $0x2c] sm:$0xf]
    %v345 = vld [vmem:[#allocation7 + $0x30] sm:$0xf]
    %v346 = vld [vmem:[#allocation7 + $0x34] sm:$0xf]
    %v347 = vld [vmem:[#allocation7 + $0x38] sm:$0xf]
    %v348 = vld [vmem:[#allocation7 + $0x3c] sm:$0xf]
    %v349 = vld [vmem:[%s6] sm:$0x1]
    %v351 = vperm.slane %v349, 0
    %v369 = vunpack.c.l.b16 %v333
    %v370 = vunpack.c.l.b16 %v334
    %v371 = vunpack.c.l.b16 %v335
    %v372 = vunpack.c.l.b16 %v336
    %v373 = vunpack.c.l.b16 %v337
    %v374 = vunpack.c.l.b16 %v338
    %v375 = vunpack.c.l.b16 %v339
    %v376 = vunpack.c.l.b16 %v340
    %v377 = vunpack.c.l.b16 %v341
    %v378 = vunpack.c.l.b16 %v342
    %v379 = vunpack.c.l.b16 %v343
    %v380 = vunpack.c.l.b16 %v344
    %v381 = vunpack.c.l.b16 %v345
    %v382 = vunpack.c.l.b16 %v346
    %v383 = vunpack.c.l.b16 %v347
    %v384 = vunpack.c.l.b16 %v348
    %v385 = vpack.c.b16 %v370, %v369
    %v386 = vpack.c.b16 %v372, %v371
    %v387 = vpack.c.b16 %v374, %v373
    %v388 = vpack.c.b16 %v376, %v375
    %v389 = vpack.c.b16 %v378, %v377
    %v390 = vpack.c.b16 %v380, %v379
    %v391 = vpack.c.b16 %v382, %v381
    %v392 = vpack.c.b16 %v384, %v383
    %401 = vmatpush.bf16.msra.mxu0 %v392
    %402 = vmatpush.bf16.msra.mxu0 %v391
    %403 = vmatpush.bf16.msra.mxu0 %v390
    %404 = vmatpush.bf16.msra.mxu0 %v389
    %405 = vmatpush.bf16.msra.mxu0 %v388
    %406 = vmatpush.bf16.msra.mxu0 %v387
    %407 = vmatpush.bf16.msra.mxu0 %v386
    %408 = vmatpush.bf16.msra.mxu0 %v385
    %409 = vmatmul.bf16.gmra.mxu0 %v332
    %v410 = vpop.f32.mrf.mxu0
    %v411 = vadd.f32 %v351, %v410
    %v412 = vpop.f32.mrf.mxu0
    %413 = vdwg.mxu0
    %vm414 = vcmp.gt.f32.partialorder %v411, 0.0
    %v415 = vmul.f32 %v411, 0.1
    %v416 = vsel %vm414, %v411, %v415
    %v417 = vpack.c.bf16 %v416, %v416
    %v418 = vld [vmem:[%s7] sm:$0xf]
    %v419 = vld [vmem:[%s7 + $0x4] sm:$0xf]
    %v420 = vld [vmem:[%s7 + $0x8] sm:$0xf]
    %v421 = vld [vmem:[%s7 + $0xc] sm:$0xf]
    %v422 = vld [vmem:[%s7 + $0x10] sm:$0xf]
    %v423 = vld [vmem:[%s7 + $0x14] sm:$0xf]
    %v424 = vld [vmem:[%s7 + $0x18] sm:$0xf]
    %v425 = vld [vmem:[%s7 + $0x1c] sm:$0xf]
    %v426 = vld [vmem:[%s7 + $0x20] sm:$0xf]
    %v427 = vld [vmem:[%s7 + $0x24] sm:$0xf]
    %v428 = vld [vmem:[%s7 + $0x28] sm:$0xf]
    %v429 = vld [vmem:[%s7 + $0x2c] sm:$0xf]
    %v430 = vld [vmem:[%s7 + $0x30] sm:$0xf]
    %v431 = vld [vmem:[%s7 + $0x34] sm:$0xf]
    %v432 = vld [vmem:[%s7 + $0x38] sm:$0xf]
    %v433 = vld [vmem:[%s7 + $0x3c] sm:$0xf]
    %v434 = vld [vmem:[%s8] sm:$0x1]
    %v436 = vperm.slane %v434, 0
    %v454 = vunpack.c.l.b16 %v418
    %v455 = vunpack.c.l.b16 %v419
    %v456 = vunpack.c.l.b16 %v420
    %v457 = vunpack.c.l.b16 %v421
    %v458 = vunpack.c.l.b16 %v422
    %v459 = vunpack.c.l.b16 %v423
    %v460 = vunpack.c.l.b16 %v424
    %v461 = vunpack.c.l.b16 %v425
    %v462 = vunpack.c.l.b16 %v426
    %v463 = vunpack.c.l.b16 %v427
    %v464 = vunpack.c.l.b16 %v428
    %v465 = vunpack.c.l.b16 %v429
    %v466 = vunpack.c.l.b16 %v430
    %v467 = vunpack.c.l.b16 %v431
    %v468 = vunpack.c.l.b16 %v432
    %v469 = vunpack.c.l.b16 %v433
    %v470 = vpack.c.b16 %v455, %v454
    %v471 = vpack.c.b16 %v457, %v456
    %v472 = vpack.c.b16 %v459, %v458
    %v473 = vpack.c.b16 %v461, %v460
    %v474 = vpack.c.b16 %v463, %v462
    %v475 = vpack.c.b16 %v465, %v464
    %v476 = vpack.c.b16 %v467, %v466
    %v477 = vpack.c.b16 %v469, %v468
    %486 = vmatpush.bf16.msra.mxu0 %v477
    %487 = vmatpush.bf16.msra.mxu0 %v476
    %488 = vmatpush.bf16.msra.mxu0 %v475
    %489 = vmatpush.bf16.msra.mxu0 %v474
    %490 = vmatpush.bf16.msra.mxu0 %v473
    %491 = vmatpush.bf16.msra.mxu0 %v472
    %492 = vmatpush.bf16.msra.mxu0 %v471
    %493 = vmatpush.bf16.msra.mxu0 %v470
    %494 = vmatmul.bf16.gmra.mxu0 %v417
    %v495 = vpop.f32.mrf.mxu0
    %v496 = vadd.f32 %v436, %v495
    %v497 = vpop.f32.mrf.mxu0
    %498 = vdwg.mxu0
    %vm499 = vcmask 48128
    %500 = vst.msk [vmem:[#allocation8] sm:$0xff] %vm499, %v496
    // Predicated region
    $region50: #{tpu_custom_call.1} parent=1 // pred_check
      _
    $region51: #{tpu_custom_call.1} parent=1 // pred_check_branch
      %502 = sbr.rel (0) target = $region53
    $region52: #{tpu_custom_call.1} parent=1 // pred_region
      %504 = vsyncadd [#allocation4], 0
      %s506 = sshll.u32 [#allocation8], 4
      %s507 = int_to_ptr.vmem [resolvable:$true] %s506
      %s508 = sshll.u32 %s9, 4
      %s509 = int_to_ptr.hbm [resolvable:$true] %s508
      %511 = dma.vmem_to_hbm [thread:$0]  %s507, 128, %s509, [#allocation4]
    $region53: #{tpu_custom_call.1} parent=1 // pred_fallthru
      _
    // Predicated region
    $region54: #{tpu_custom_call.1} parent=1 // pred_check
      _
    $region55: #{tpu_custom_call.1} parent=1 // pred_check_branch
      %513 = sbr.rel (0) target = $region57
    $region56: #{tpu_custom_call.1} parent=1 // pred_region
      %515 = dma.done [#allocation4], 128
    $region57: #{tpu_custom_call.1} parent=1 // pred_fallthru
      _
    %516 = vsyncpa [#allocation3], 1
    %517 = vsyncpa [#allocation6], 1
    %518 = vsyncpa [#allocation4], 1

</llo_original>
